<compile_context>
chip_gen: v7x
topology: tpu7x:2x2x1
jax: 0.10.0
libtpu: 0.0.40
codegen_flags: <defaults>
</compile_context>

<pallas_src>
import functools

import jax
import jax.numpy as jnp
from jax.experimental import pallas as pl
from jax.experimental.pallas import tpu as pltpu


def _ce_label_smooth_kernel(
    logits_ref, targets_ref, loss_ref, *, epsilon, num_classes, n_rows, block_rows
):
    x = logits_ref[...].astype(jnp.float32)          # (TN, C) f32 in-register
    t = targets_ref[...]                             # (TN, 1) int32

    # Numerically stable logsumexp along the class (lane) axis.
    m = jnp.max(x, axis=1, keepdims=True)            # (TN, 1)
    lse = jnp.log(jnp.sum(jnp.exp(x - m), axis=1, keepdims=True)) + m  # (TN, 1)

    # Gather x[i, t_i] via lane iota == target, then row-reduce (XLU).
    class_ids = jax.lax.broadcasted_iota(jnp.int32, x.shape, 1)        # (TN, C)
    x_t = jnp.sum(jnp.where(class_ids == t, x, 0.0), axis=1, keepdims=True)

    # Uniform-smoothing term needs sum_c x[i, c].
    sum_x = jnp.sum(x, axis=1, keepdims=True)

    # Closed form of -sum_c smooth[i,c] * log_prob[i,c].
    loss = lse - (1.0 - epsilon) * x_t - (epsilon / num_classes) * sum_x  # (TN, 1)

    # Mask rows past the true batch size (last partial tile).
    row = pl.program_id(0) * block_rows + jax.lax.broadcasted_iota(
        jnp.int32, loss.shape, 0
    )
    loss_ref[...] = jnp.where(row < n_rows, loss, 0.0)


def cross_entropy_label_smooth(logits, targets, *, epsilon, block_rows=None):
    """logits: (N, C) float (f32 or bf16); targets: (N,) int class indices.

    Returns the scalar f32 label-smoothed cross-entropy loss.
    """
    n, c = logits.shape
    targets_2d = targets.astype(jnp.int32).reshape(n, 1)

    itemsize = jnp.dtype(logits.dtype).itemsize
    if block_rows is None:
        # ~6 MiB per logits tile -> ~12 MiB double-buffered, safe on v5e/v6e/v7x.
        budget_bytes = 6 * 1024 * 1024
        mult = 16 if itemsize < 4 else 8           # sublane packing for bf16
        block_rows = budget_bytes // max(1, c * itemsize)
        block_rows = max(mult, min(512, (block_rows // mult) * mult))
        # No point in tiles larger than the (row-padded) batch.
        n_padded = ((n + mult - 1) // mult) * mult
        block_rows = min(block_rows, max(mult, n_padded))

    grid = (pl.cdiv(n, block_rows),)
    kernel = functools.partial(
        _ce_label_smooth_kernel,
        epsilon=float(epsilon),
        num_classes=int(c),
        n_rows=int(n),
        block_rows=int(block_rows),
    )

    per_row = pl.pallas_call(
        kernel,
        out_shape=jax.ShapeDtypeStruct((n, 1), jnp.float32),
        grid_spec=pltpu.PrefetchScalarGridSpec(
            num_scalar_prefetch=0,
            grid=grid,
            in_specs=[
                pl.BlockSpec((block_rows, c), lambda i: (i, 0)),   # logits tile
                pl.BlockSpec((block_rows, 1), lambda i: (i, 0)),   # targets tile
            ],
            out_specs=pl.BlockSpec((block_rows, 1), lambda i: (i, 0)),
        ),
        compiler_params=pltpu.CompilerParams(
            dimension_semantics=("parallel",),        # shard tiles across TCs (v7x)
            vmem_limit_bytes=32 * 1024 * 1024,        # explicit: v5e default is 16 MiB
        ),
    )(logits, targets_2d)

    return jnp.sum(per_row) / jnp.float32(n)


def _reference(logits, targets, epsilon):
    # Pure-JAX reference mirroring the PyTorch forward.
    log_prob = jax.nn.log_softmax(logits.astype(jnp.float32), axis=1)
    onehot = jax.nn.one_hot(targets, logits.shape[1], dtype=jnp.float32)
    smooth = (1.0 - epsilon) * onehot + epsilon / logits.shape[1]
    return (-smooth * log_prob).mean(0).sum()


if __name__ == "__main__":
    num_classes = 128
    batch = 8
    epsilon = 0.1

    key = jax.random.PRNGKey(0)
    k_logits, k_targets = jax.random.split(key)
    logits = jax.random.normal(k_logits, (batch, num_classes), dtype=jnp.float32)
    targets = jax.random.randint(k_targets, (batch,), 0, num_classes, dtype=jnp.int32)

    loss = cross_entropy_label_smooth(logits, targets, epsilon=epsilon)
    loss = jax.block_until_ready(loss)

    ref = _reference(logits, targets, epsilon)
    assert jnp.allclose(loss, ref, rtol=1e-5, atol=1e-5), (loss, ref)

    print("KERNEL_OK")
</pallas_src>

<mosaic_0001>
module attributes {stable_mosaic.version = 11 : i64} {
  func.func @_ce_label_smooth_kernel(%arg0: i32, %arg1: memref<8x128xf32, #tpu.memory_space<vmem>>, %arg2: memref<8x1xi32, #tpu.memory_space<vmem>>, %arg3: memref<8x1xf32, #tpu.memory_space<vmem>>) attributes {dimension_semantics = [#tpu.dimension_semantics<parallel>], iteration_bounds = array<i64: 1>, scalar_prefetch = 0 : i64, scratch_operands = 0 : i64, tpu.core_type = #tpu.core_type<tc>, window_params = [{transform_indices = @transform_0, window_bounds = array<i64: 8, 128>}, {transform_indices = @transform_1, window_bounds = array<i64: 8, 1>}, {transform_indices = @transform_2, window_bounds = array<i64: 8, 1>}]} {
    %c0 = arith.constant 0 : index
    %c0_0 = arith.constant 0 : index
    %0 = vector.load %arg1[%c0, %c0_0] : memref<8x128xf32, #tpu.memory_space<vmem>>, vector<8x128xf32>
    %c0_1 = arith.constant 0 : index
    %c0_2 = arith.constant 0 : index
    %1 = vector.load %arg2[%c0_1, %c0_2] : memref<8x1xi32, #tpu.memory_space<vmem>>, vector<8x1xi32>
    %cst = arith.constant dense<0xFF800000> : vector<8xf32>
    %2 = vector.multi_reduction <maximumf>, %0, %cst [1] : vector<8x128xf32> to vector<8xf32>
    %3 = vector.shape_cast %2 : vector<8xf32> to vector<8x1xf32>
    %4 = vector.broadcast %3 : vector<8x1xf32> to vector<8x128xf32>
    %5 = arith.subf %0, %4 : vector<8x128xf32>
    %6 = math.exp %5 : vector<8x128xf32>
    %cst_3 = arith.constant dense<0.000000e+00> : vector<8xf32>
    %7 = vector.multi_reduction <add>, %6, %cst_3 [1] : vector<8x128xf32> to vector<8xf32>
    %8 = vector.shape_cast %7 : vector<8xf32> to vector<8x1xf32>
    %9 = math.log %8 : vector<8x1xf32>
    %10 = arith.addf %9, %3 : vector<8x1xf32>
    %11 = tpu.iota {dimensions = array<i32: 1>} : vector<8x128xi32>
    %12 = vector.broadcast %1 : vector<8x1xi32> to vector<8x128xi32>
    %13 = arith.cmpi eq, %11, %12 : vector<8x128xi32>
    %cst_4 = arith.constant 0.000000e+00 : f32
    %14 = vector.broadcast %cst_4 : f32 to vector<8x128xf32>
    %15 = arith.select %13, %0, %14 : vector<8x128xi1>, vector<8x128xf32>
    %cst_5 = arith.constant dense<0.000000e+00> : vector<8xf32>
    %16 = vector.multi_reduction <add>, %15, %cst_5 [1] : vector<8x128xf32> to vector<8xf32>
    %17 = vector.shape_cast %16 : vector<8xf32> to vector<8x1xf32>
    %cst_6 = arith.constant dense<0.000000e+00> : vector<8xf32>
    %18 = vector.multi_reduction <add>, %0, %cst_6 [1] : vector<8x128xf32> to vector<8xf32>
    %19 = vector.shape_cast %18 : vector<8xf32> to vector<8x1xf32>
    %cst_7 = arith.constant 0.899999976 : f32
    %20 = vector.broadcast %cst_7 : f32 to vector<8x1xf32>
    %21 = arith.mulf %20, %17 : vector<8x1xf32>
    %22 = arith.subf %10, %21 : vector<8x1xf32>
    %cst_8 = arith.constant 7.812500e-04 : f32
    %23 = vector.broadcast %cst_8 : f32 to vector<8x1xf32>
    %24 = arith.mulf %23, %19 : vector<8x1xf32>
    %25 = arith.subf %22, %24 : vector<8x1xf32>
    %c8_i32 = arith.constant 8 : i32
    %26 = arith.muli %arg0, %c8_i32 : i32
    %27 = tpu.iota {dimensions = array<i32: 0>} : vector<8x1xi32>
    %28 = vector.broadcast %26 : i32 to vector<8x1xi32>
    %29 = arith.addi %28, %27 : vector<8x1xi32>
    %c8_i32_9 = arith.constant 8 : i32
    %30 = vector.broadcast %c8_i32_9 : i32 to vector<8x1xi32>
    %31 = arith.cmpi slt, %29, %30 : vector<8x1xi32>
    %cst_10 = arith.constant 0.000000e+00 : f32
    %32 = vector.broadcast %cst_10 : f32 to vector<8x1xf32>
    %33 = arith.select %31, %25, %32 : vector<8x1xi1>, vector<8x1xf32>
    %c0_11 = arith.constant 0 : index
    %c0_12 = arith.constant 0 : index
    %34 = vector.load %arg3[%c0_11, %c0_12] : memref<8x1xf32, #tpu.memory_space<vmem>>, vector<8x1xf32>
    tpu.vector_store %arg3[%c0_11, %c0_12], %33 {strides = array<i32>} : memref<8x1xf32, #tpu.memory_space<vmem>>, vector<8x1xf32>,
    return
  }
  func.func @transform_0(%arg0: i32) -> (i32, i32) {
    %c0_i32 = arith.constant 0 : i32
    %c0_i32_0 = arith.constant 0 : i32
    return %arg0, %c0_i32 : i32, i32
  }
  func.func @transform_1(%arg0: i32) -> (i32, i32) {
    %c0_i32 = arith.constant 0 : i32
    %c0_i32_0 = arith.constant 0 : i32
    return %arg0, %c0_i32 : i32, i32
  }
  func.func @transform_2(%arg0: i32) -> (i32, i32) {
    %c0_i32 = arith.constant 0 : i32
    %c0_i32_0 = arith.constant 0 : i32
    return %arg0, %c0_i32 : i32, i32
  }
}

</mosaic_0001>

<llo_original>
// kernel: tpu_custom_call.1
$region0: #{tpu_custom_call.1}
  #allocation0 [shape = 'u32[]', space=smem, size = 0x4, offset = 0x4, fixed_abs, tag = 'smem constant byte address 0x4 - core index']
  #allocation1 [shape = 'u32[144,128]{1,0:T(1,128)}', space=vmem, size = 0x12000, scoped, tag = 'internal scratch']
  %s0 = inlined_call_operand.vmem [shape: f32[8,128], index: 0, kind: input, shape index: {}]
  %s1 = inlined_call_operand.vmem [shape: s32[8,1], index: 1, kind: input, shape index: {}]
  %s2 = inlined_call_operand.vmem [shape: f32[8,1], index: 2, kind: output, shape index: {}]
  %s3 = sld [smem:[#allocation0]]
  $region18: #{tpu_custom_call.1} parent=0
    _
  %s5 = ssub.s32 1, %s3
  %s6 = scalar_select 0, %s5, %s3
  // Predicated region
  $region2: #{tpu_custom_call.1} parent=0 // pred_check
    _
  $region3: #{tpu_custom_call.1} parent=0 // pred_check_branch
    %8 = sbr.rel (0) target = $region5
  $region4: #{tpu_custom_call.1} parent=0 // pred_region
    _
  $region5: #{tpu_custom_call.1} parent=0 // pred_fallthru
    _
  // Predicated region
  $region6: #{tpu_custom_call.1} parent=0 // pred_check
    _
  $region7: #{tpu_custom_call.1} parent=0 // pred_check_branch
    %10 = sbr.rel (0) target = $region9
  $region8: #{tpu_custom_call.1} parent=0 // pred_region
    _
  $region9: #{tpu_custom_call.1} parent=0 // pred_fallthru
    _
  %v11 = vld [vmem:[%s0] sm:$0xff]
  %v12 = vld [vmem:[%s1] sm:$0xff]
  %13 = vmax.xlane.f32.xlu0 %v11
  %v14 = vpop.xlane.xlu0 %13
  %v15 = vsub.f32 %v11, %v14
  %v16 = vmul.f32 %v15, 1.442695
  %v17 = vpow.pop %v16
  %18 = vadd.xlane.f32.xlu0 %v17
  %v19 = vpop.xlane.xlu0 %18
  %v20 = vlog2.pop %v19
  %v21 = vmul.f32 %v20, 0.6931472
  %v22 = vadd.f32 %v21, %v14
  %v23 = vlaneseq
  %v24 = vand.u32 %v23, 127
  %25 = vset.pattern.permute.xlu0 0
  %26 = vperm.xlu0 %25, %v12
  %v27 = vpop.permute.xlu0 %26
  %vm28 = vcmp.eq.s32.totalorder %v24, %v27
  %v29 = vsel %vm28, %v11, 0.0
  %30 = vadd.xlane.f32.xlu0 %v29
  %v31 = vpop.xlane.xlu0 %30
  %32 = vadd.xlane.f32.xlu0 %v11
  %v33 = vpop.xlane.xlu0 %32
  %v34 = vmul.f32 %v31, 0.9
  %v35 = vsub.f32 %v22, %v34
  %v36 = vmul.f32 %v33, 0.00078125
  %v37 = vsub.f32 %v35, %v36
  %s38 = smul.u32 0, 8
  %v39 = vlaneseq
  %v40 = vshrl.u32 %v39, 7
  %v41 = vstv %s38
  %v42 = vadd.s32 %v41, %v40
  %vm43 = vcmp.lt.s32.totalorder %v42, 8
  %v44 = vsel %vm43, %v37, 0.0
  %vm45 = vcmask 7168
  %46 = vst.msk [vmem:[%s2] sm:$0xff] %vm45, %v44
  // Predicated region
  $region10: #{tpu_custom_call.1} parent=0 // pred_check
    _
  $region11: #{tpu_custom_call.1} parent=0 // pred_check_branch
    %48 = sbr.rel (0) target = $region13
  $region12: #{tpu_custom_call.1} parent=0 // pred_region
    _
  $region13: #{tpu_custom_call.1} parent=0 // pred_fallthru
    _
  // Predicated region
  $region14: #{tpu_custom_call.1} parent=0 // pred_check
    _
  $region15: #{tpu_custom_call.1} parent=0 // pred_check_branch
    %50 = sbr.rel (0) target = $region17
  $region16: #{tpu_custom_call.1} parent=0 // pred_region
    _
  $region17: #{tpu_custom_call.1} parent=0 // pred_fallthru
    _

</llo_original>
